<compile_context>
chip_gen: v5e
topology: v5e:2x2
jax: 0.10.0
libtpu: 0.0.40
codegen_flags: <defaults>
</compile_context>

<pallas_src>
import functools

import jax
import jax.numpy as jnp
from jax.experimental import pallas as pl
from jax.experimental.pallas import tpu as pltpu


def _pick_tt(T, max_tt):
    """Largest timestep-block size <= max_tt that divides T."""
    for tt in range(min(max_tt, T), 0, -1):
        if T % tt == 0:
            return tt
    return 1


def _rnn_seq_kernel(xw_ref, wh_ref, h0_ref, out_ref, h_scratch, *, tt):
    """One grid step == TT timesteps of the recurrence.

    xw_ref   : (TT, B, n_embd2)   precomputed x@Wx + b slab (pipelined/double-buffered)
    wh_ref   : (n_embd2, n_embd2) VMEM-resident across all grid steps
    h0_ref   : (B, n_embd2)       initial hidden state (resident)
    out_ref  : (TT, B, n_embd2)   h_t outputs for this slab
    h_scratch: (B, n_embd2) f32   hidden-state carry, persists across grid steps
    """
    s = pl.program_id(0)

    @pl.when(s == 0)
    def _():
        h_scratch[...] = h0_ref[...].astype(jnp.float32)

    wh = wh_ref[...]            # hoisted: one VMEM load per grid step
    h = h_scratch[...]          # (B, n_embd2) f32 carry

    # Statically-unrolled TT-step recurrence: static first-axis slices of
    # xw_ref/out_ref are zero-cost, and the unrolled window lets the LLO
    # scheduler overlap MXU fill/drain, EUP tanh, and the xw/out DMAs.
    for t in range(tt):
        y = xw_ref[t] + jnp.dot(h, wh, preferred_element_type=jnp.float32)
        h = jnp.tanh(y)         # f32 epilogue (EUP); v5e has no bf16 VPU/EUP
        out_ref[t] = h.astype(out_ref.dtype)

    h_scratch[...] = h


def rnn_forward(x, h0, weight, bias, *, max_tt=16):
    """Apply the RNNCell over a whole sequence.

    x      : (T, B, n_embd)
    h0     : (B, n_embd2)
    weight : (n_embd2, n_embd + n_embd2)  torch.nn.Linear layout (out, in)
    bias   : (n_embd2,)
    returns: (T, B, n_embd2)  hidden states h_1 .. h_T
    """
    T, B, n_embd = x.shape
    n_embd2 = weight.shape[0]

    # Split / transpose the Linear weight ONCE.
    wx = weight[:, :n_embd].T          # (n_embd,  n_embd2)
    wh = weight[:, n_embd:].T          # (n_embd2, n_embd2)

    # Time-independent input projection (no sequential dependence): one big
    # (T*B, n_embd) @ (n_embd, n_embd2) matmul that fills the MXU. Bias folded
    # in here so the recurrence body is just tanh(xw_t + h @ Wh).
    xw = (jnp.dot(x.reshape(T * B, n_embd), wx,
                  preferred_element_type=jnp.float32,
                  precision=jax.lax.Precision.HIGHEST)
          + bias.astype(jnp.float32)).reshape(T, B, n_embd2)

    tt = _pick_tt(T, max_tt)
    n_steps = T // tt

    cost = pl.CostEstimate(
        flops=2 * T * B * n_embd2 * n_embd2 + 2 * T * B * n_embd2,
        transcendentals=T * B * n_embd2,
        bytes_accessed=4 * (xw.size + wh.size + h0.size + T * B * n_embd2),
    )

    kernel = functools.partial(_rnn_seq_kernel, tt=tt)

    return pl.pallas_call(
        kernel,
        out_shape=jax.ShapeDtypeStruct((T, B, n_embd2), x.dtype),
        grid_spec=pltpu.PrefetchScalarGridSpec(
            num_scalar_prefetch=0,
            grid=(n_steps,),
            in_specs=[
                # Stream TT timesteps of xW per grid step (auto double-buffered).
                pl.BlockSpec((tt, B, n_embd2), lambda s: (s, 0, 0)),
                # Same block every step -> Wh / h0 stay resident in VMEM.
                pl.BlockSpec((n_embd2, n_embd2), lambda s: (0, 0)),
                pl.BlockSpec((B, n_embd2), lambda s: (0, 0)),
            ],
            out_specs=pl.BlockSpec((tt, B, n_embd2), lambda s: (s, 0, 0)),
            scratch_shapes=[pltpu.VMEM((B, n_embd2), jnp.float32)],
        ),
        compiler_params=pltpu.CompilerParams(
            # The time axis carries h_t -> intrinsically sequential.
            dimension_semantics=("arbitrary",),
        ),
        cost_estimate=cost,
    )(xw, wh, h0)


def rnn_cell(xt, h_prev, weight, bias):
    """Single-step forward, matching PyTorch RNNCell.forward(xt, h_prev) exactly."""
    return rnn_forward(xt[None, ...], h_prev, weight, bias)[0]


# ----------------------------- pure-JAX references -----------------------------

def rnn_cell_ref(xt, h_prev, weight, bias):
    xh = jnp.concatenate([xt, h_prev], axis=1)
    y = jnp.dot(xh, weight.T, precision=jax.lax.Precision.HIGHEST) + bias
    return jnp.tanh(y)


def rnn_forward_ref(x, h0, weight, bias):
    def step(h, xt):
        h_new = rnn_cell_ref(xt, h, weight, bias)
        return h_new, h_new
    _, hs = jax.lax.scan(step, h0, x)
    return hs


if __name__ == "__main__":
    # Small shapes consistent with the module; n_embd2=128 keeps output stores
    # lane-dense, B=8 fills the sublane dim, T=32 with TT=16 exercises the
    # hidden-state carry across grid steps.
    T = 32          # sequence length
    B = 8           # batch
    n_embd = 64     # input embedding dim
    n_embd2 = 128   # hidden state dim

    key = jax.random.PRNGKey(0)
    k_x, k_h, k_w, k_b = jax.random.split(key, 4)

    x = jax.random.normal(k_x, (T, B, n_embd), dtype=jnp.float32)
    h0 = jax.random.normal(k_h, (B, n_embd2), dtype=jnp.float32)

    fan_in = n_embd + n_embd2
    bound = 1.0 / (fan_in ** 0.5)
    weight = jax.random.uniform(k_w, (n_embd2, fan_in), jnp.float32, -bound, bound)
    bias = jax.random.uniform(k_b, (n_embd2,), jnp.float32, -bound, bound)

    # Full-sequence fused kernel vs. lax.scan reference.
    hs = jax.block_until_ready(rnn_forward(x, h0, weight, bias, max_tt=16))
    hs_ref = rnn_forward_ref(x, h0, weight, bias)
    assert hs.shape == (T, B, n_embd2)
    max_err = float(jnp.max(jnp.abs(hs - hs_ref)))
    assert jnp.allclose(hs, hs_ref, atol=2e-4, rtol=2e-4), max_err

    # Single-step path (the original PyTorch module's forward).
    ht = jax.block_until_ready(rnn_cell(x[0], h0, weight, bias))
    ht_ref = rnn_cell_ref(x[0], h0, weight, bias)
    assert ht.shape == (B, n_embd2)
    assert jnp.allclose(ht, ht_ref, atol=2e-4, rtol=2e-4)

    print("KERNEL_OK")
</pallas_src>

<mosaic_0001>
module attributes {stable_mosaic.version = 11 : i64} {
  func.func @_rnn_seq_kernel(%arg0: i32, %arg1: memref<16x8x128xf32, #tpu.memory_space<vmem>>, %arg2: memref<128x128xf32, #tpu.memory_space<vmem>>, %arg3: memref<8x128xf32, #tpu.memory_space<vmem>>, %arg4: memref<16x8x128xf32, #tpu.memory_space<vmem>>, %arg5: memref<8x128xf32, #tpu.memory_space<vmem>>) attributes {dimension_semantics = [#tpu.dimension_semantics<arbitrary>], iteration_bounds = array<i64: 2>, scalar_prefetch = 0 : i64, scratch_operands = 1 : i64, tpu.core_type = #tpu.core_type<tc>, window_params = [{transform_indices = @transform_0, window_bounds = array<i64: 16, 8, 128>}, {pipeline_mode = #tpu.pipeline_mode<synchronous>, transform_indices = @transform_1, window_bounds = array<i64: 128, 128>}, {pipeline_mode = #tpu.pipeline_mode<synchronous>, transform_indices = @transform_2, window_bounds = array<i64: 8, 128>}, {transform_indices = @transform_3, window_bounds = array<i64: 16, 8, 128>}]} {
    %c0_i32 = arith.constant 0 : i32
    %0 = arith.cmpi eq, %arg0, %c0_i32 : i32
    %1 = arith.extui %0 : i1 to i32
    %c0_i32_0 = arith.constant 0 : i32
    %2 = arith.cmpi ne, %1, %c0_i32_0 : i32
    scf.if %2 {
      %c0_102 = arith.constant 0 : index
      %c0_103 = arith.constant 0 : index
      %134 = vector.load %arg3[%c0_102, %c0_103] : memref<8x128xf32, #tpu.memory_space<vmem>>, vector<8x128xf32>
      %c0_104 = arith.constant 0 : index
      %c0_105 = arith.constant 0 : index
      %135 = vector.load %arg5[%c0_104, %c0_105] : memref<8x128xf32, #tpu.memory_space<vmem>>, vector<8x128xf32>
      tpu.vector_store %arg5[%c0_104, %c0_105], %134 {strides = array<i32>} : memref<8x128xf32, #tpu.memory_space<vmem>>, vector<8x128xf32>,
    } else {
    }
    %c0 = arith.constant 0 : index
    %c0_1 = arith.constant 0 : index
    %3 = vector.load %arg2[%c0, %c0_1] : memref<128x128xf32, #tpu.memory_space<vmem>>, vector<128x128xf32>
    %c0_2 = arith.constant 0 : index
    %c0_3 = arith.constant 0 : index
    %4 = vector.load %arg5[%c0_2, %c0_3] : memref<8x128xf32, #tpu.memory_space<vmem>>, vector<8x128xf32>
    %c0_4 = arith.constant 0 : index
    %c0_5 = arith.constant 0 : index
    %c0_6 = arith.constant 0 : index
    %5 = vector.load %arg1[%c0_4, %c0_5, %c0_6] : memref<16x8x128xf32, #tpu.memory_space<vmem>>, vector<1x8x128xf32>
    %6 = vector.shape_cast %5 : vector<1x8x128xf32> to vector<8x128xf32>
    %cst = arith.constant dense<0.000000e+00> : vector<8x128xf32>
    %7 = tpu.matmul %4, %3, %cst {dimension_numbers = #tpu.dot_dimension_numbers<[1], [0], [0], [1], [0, 0, 1, 1], [], []>} : vector<8x128xf32>, vector<128x128xf32>, vector<8x128xf32> -> vector<8x128xf32>
    %8 = arith.addf %6, %7 : vector<8x128xf32>
    %9 = math.tanh %8 : vector<8x128xf32>
    %c0_7 = arith.constant 0 : index
    %c0_8 = arith.constant 0 : index
    %c0_9 = arith.constant 0 : index
    %10 = vector.load %arg4[%c0_7, %c0_8, %c0_9] : memref<16x8x128xf32, #tpu.memory_space<vmem>>, vector<1x8x128xf32>
    %11 = vector.shape_cast %10 : vector<1x8x128xf32> to vector<8x128xf32>
    %12 = vector.shape_cast %9 : vector<8x128xf32> to vector<1x8x128xf32>
    tpu.vector_store %arg4[%c0_7, %c0_8, %c0_9], %12 {strides = array<i32>} : memref<16x8x128xf32, #tpu.memory_space<vmem>>, vector<1x8x128xf32>,
    %c1 = arith.constant 1 : index
    %c0_10 = arith.constant 0 : index
    %c0_11 = arith.constant 0 : index
    %13 = vector.load %arg1[%c1, %c0_10, %c0_11] : memref<16x8x128xf32, #tpu.memory_space<vmem>>, vector<1x8x128xf32>
    %14 = vector.shape_cast %13 : vector<1x8x128xf32> to vector<8x128xf32>
    %cst_12 = arith.constant dense<0.000000e+00> : vector<8x128xf32>
    %15 = tpu.matmul %9, %3, %cst_12 {dimension_numbers = #tpu.dot_dimension_numbers<[1], [0], [0], [1], [0, 0, 1, 1], [], []>} : vector<8x128xf32>, vector<128x128xf32>, vector<8x128xf32> -> vector<8x128xf32>
    %16 = arith.addf %14, %15 : vector<8x128xf32>
    %17 = math.tanh %16 : vector<8x128xf32>
    %c1_13 = arith.constant 1 : index
    %c0_14 = arith.constant 0 : index
    %c0_15 = arith.constant 0 : index
    %18 = vector.load %arg4[%c1_13, %c0_14, %c0_15] : memref<16x8x128xf32, #tpu.memory_space<vmem>>, vector<1x8x128xf32>
    %19 = vector.shape_cast %18 : vector<1x8x128xf32> to vector<8x128xf32>
    %20 = vector.shape_cast %17 : vector<8x128xf32> to vector<1x8x128xf32>
    tpu.vector_store %arg4[%c1_13, %c0_14, %c0_15], %20 {strides = array<i32>} : memref<16x8x128xf32, #tpu.memory_space<vmem>>, vector<1x8x128xf32>,
    %c2 = arith.constant 2 : index
    %c0_16 = arith.constant 0 : index
    %c0_17 = arith.constant 0 : index
    %21 = vector.load %arg1[%c2, %c0_16, %c0_17] : memref<16x8x128xf32, #tpu.memory_space<vmem>>, vector<1x8x128xf32>
    %22 = vector.shape_cast %21 : vector<1x8x128xf32> to vector<8x128xf32>
    %cst_18 = arith.constant dense<0.000000e+00> : vector<8x128xf32>
    %23 = tpu.matmul %17, %3, %cst_18 {dimension_numbers = #tpu.dot_dimension_numbers<[1], [0], [0], [1], [0, 0, 1, 1], [], []>} : vector<8x128xf32>, vector<128x128xf32>, vector<8x128xf32> -> vector<8x128xf32>
    %24 = arith.addf %22, %23 : vector<8x128xf32>
    %25 = math.tanh %24 : vector<8x128xf32>
    %c2_19 = arith.constant 2 : index
    %c0_20 = arith.constant 0 : index
    %c0_21 = arith.constant 0 : index
    %26 = vector.load %arg4[%c2_19, %c0_20, %c0_21] : memref<16x8x128xf32, #tpu.memory_space<vmem>>, vector<1x8x128xf32>
    %27 = vector.shape_cast %26 : vector<1x8x128xf32> to vector<8x128xf32>
    %28 = vector.shape_cast %25 : vector<8x128xf32> to vector<1x8x128xf32>
    tpu.vector_store %arg4[%c2_19, %c0_20, %c0_21], %28 {strides = array<i32>} : memref<16x8x128xf32, #tpu.memory_space<vmem>>, vector<1x8x128xf32>,
    %c3 = arith.constant 3 : index
    %c0_22 = arith.constant 0 : index
    %c0_23 = arith.constant 0 : index
    %29 = vector.load %arg1[%c3, %c0_22, %c0_23] : memref<16x8x128xf32, #tpu.memory_space<vmem>>, vector<1x8x128xf32>
    %30 = vector.shape_cast %29 : vector<1x8x128xf32> to vector<8x128xf32>
    %cst_24 = arith.constant dense<0.000000e+00> : vector<8x128xf32>
    %31 = tpu.matmul %25, %3, %cst_24 {dimension_numbers = #tpu.dot_dimension_numbers<[1], [0], [0], [1], [0, 0, 1, 1], [], []>} : vector<8x128xf32>, vector<128x128xf32>, vector<8x128xf32> -> vector<8x128xf32>
    %32 = arith.addf %30, %31 : vector<8x128xf32>
    %33 = math.tanh %32 : vector<8x128xf32>
    %c3_25 = arith.constant 3 : index
    %c0_26 = arith.constant 0 : index
    %c0_27 = arith.constant 0 : index
    %34 = vector.load %arg4[%c3_25, %c0_26, %c0_27] : memref<16x8x128xf32, #tpu.memory_space<vmem>>, vector<1x8x128xf32>
    %35 = vector.shape_cast %34 : vector<1x8x128xf32> to vector<8x128xf32>
    %36 = vector.shape_cast %33 : vector<8x128xf32> to vector<1x8x128xf32>
    tpu.vector_store %arg4[%c3_25, %c0_26, %c0_27], %36 {strides = array<i32>} : memref<16x8x128xf32, #tpu.memory_space<vmem>>, vector<1x8x128xf32>,
    %c4 = arith.constant 4 : index
    %c0_28 = arith.constant 0 : index
    %c0_29 = arith.constant 0 : index
    %37 = vector.load %arg1[%c4, %c0_28, %c0_29] : memref<16x8x128xf32, #tpu.memory_space<vmem>>, vector<1x8x128xf32>
    %38 = vector.shape_cast %37 : vector<1x8x128xf32> to vector<8x128xf32>
    %cst_30 = arith.constant dense<0.000000e+00> : vector<8x128xf32>
    %39 = tpu.matmul %33, %3, %cst_30 {dimension_numbers = #tpu.dot_dimension_numbers<[1], [0], [0], [1], [0, 0, 1, 1], [], []>} : vector<8x128xf32>, vector<128x128xf32>, vector<8x128xf32> -> vector<8x128xf32>
    %40 = arith.addf %38, %39 : vector<8x128xf32>
    %41 = math.tanh %40 : vector<8x128xf32>
    %c4_31 = arith.constant 4 : index
    %c0_32 = arith.constant 0 : index
    %c0_33 = arith.constant 0 : index
    %42 = vector.load %arg4[%c4_31, %c0_32, %c0_33] : memref<16x8x128xf32, #tpu.memory_space<vmem>>, vector<1x8x128xf32>
    %43 = vector.shape_cast %42 : vector<1x8x128xf32> to vector<8x128xf32>
    %44 = vector.shape_cast %41 : vector<8x128xf32> to vector<1x8x128xf32>
    tpu.vector_store %arg4[%c4_31, %c0_32, %c0_33], %44 {strides = array<i32>} : memref<16x8x128xf32, #tpu.memory_space<vmem>>, vector<1x8x128xf32>,
    %c5 = arith.constant 5 : index
    %c0_34 = arith.constant 0 : index
    %c0_35 = arith.constant 0 : index
    %45 = vector.load %arg1[%c5, %c0_34, %c0_35] : memref<16x8x128xf32, #tpu.memory_space<vmem>>, vector<1x8x128xf32>
    %46 = vector.shape_cast %45 : vector<1x8x128xf32> to vector<8x128xf32>
    %cst_36 = arith.constant dense<0.000000e+00> : vector<8x128xf32>
    %47 = tpu.matmul %41, %3, %cst_36 {dimension_numbers = #tpu.dot_dimension_numbers<[1], [0], [0], [1], [0, 0, 1, 1], [], []>} : vector<8x128xf32>, vector<128x128xf32>, vector<8x128xf32> -> vector<8x128xf32>
    %48 = arith.addf %46, %47 : vector<8x128xf32>
    %49 = math.tanh %48 : vector<8x128xf32>
    %c5_37 = arith.constant 5 : index
    %c0_38 = arith.constant 0 : index
    %c0_39 = arith.constant 0 : index
    %50 = vector.load %arg4[%c5_37, %c0_38, %c0_39] : memref<16x8x128xf32, #tpu.memory_space<vmem>>, vector<1x8x128xf32>
    %51 = vector.shape_cast %50 : vector<1x8x128xf32> to vector<8x128xf32>
    %52 = vector.shape_cast %49 : vector<8x128xf32> to vector<1x8x128xf32>
    tpu.vector_store %arg4[%c5_37, %c0_38, %c0_39], %52 {strides = array<i32>} : memref<16x8x128xf32, #tpu.memory_space<vmem>>, vector<1x8x128xf32>,
    %c6 = arith.constant 6 : index
    %c0_40 = arith.constant 0 : index
    %c0_41 = arith.constant 0 : index
    %53 = vector.load %arg1[%c6, %c0_40, %c0_41] : memref<16x8x128xf32, #tpu.memory_space<vmem>>, vector<1x8x128xf32>
    %54 = vector.shape_cast %53 : vector<1x8x128xf32> to vector<8x128xf32>
    %cst_42 = arith.constant dense<0.000000e+00> : vector<8x128xf32>
    %55 = tpu.matmul %49, %3, %cst_42 {dimension_numbers = #tpu.dot_dimension_numbers<[1], [0], [0], [1], [0, 0, 1, 1], [], []>} : vector<8x128xf32>, vector<128x128xf32>, vector<8x128xf32> -> vector<8x128xf32>
    %56 = arith.addf %54, %55 : vector<8x128xf32>
    %57 = math.tanh %56 : vector<8x128xf32>
    %c6_43 = arith.constant 6 : index
    %c0_44 = arith.constant 0 : index
    %c0_45 = arith.constant 0 : index
    %58 = vector.load %arg4[%c6_43, %c0_44, %c0_45] : memref<16x8x128xf32, #tpu.memory_space<vmem>>, vector<1x8x128xf32>
    %59 = vector.shape_cast %58 : vector<1x8x128xf32> to vector<8x128xf32>
    %60 = vector.shape_cast %57 : vector<8x128xf32> to vector<1x8x128xf32>
    tpu.vector_store %arg4[%c6_43, %c0_44, %c0_45], %60 {strides = array<i32>} : memref<16x8x128xf32, #tpu.memory_space<vmem>>, vector<1x8x128xf32>,
    %c7 = arith.constant 7 : index
    %c0_46 = arith.constant 0 : index
    %c0_47 = arith.constant 0 : index
    %61 = vector.load %arg1[%c7, %c0_46, %c0_47] : memref<16x8x128xf32, #tpu.memory_space<vmem>>, vector<1x8x128xf32>
    %62 = vector.shape_cast %61 : vector<1x8x128xf32> to vector<8x128xf32>
    %cst_48 = arith.constant dense<0.000000e+00> : vector<8x128xf32>
    %63 = tpu.matmul %57, %3, %cst_48 {dimension_numbers = #tpu.dot_dimension_numbers<[1], [0], [0], [1], [0, 0, 1, 1], [], []>} : vector<8x128xf32>, vector<128x128xf32>, vector<8x128xf32> -> vector<8x128xf32>
    %64 = arith.addf %62, %63 : vector<8x128xf32>
    %65 = math.tanh %64 : vector<8x128xf32>
    %c7_49 = arith.constant 7 : index
    %c0_50 = arith.constant 0 : index
    %c0_51 = arith.constant 0 : index
    %66 = vector.load %arg4[%c7_49, %c0_50, %c0_51] : memref<16x8x128xf32, #tpu.memory_space<vmem>>, vector<1x8x128xf32>
    %67 = vector.shape_cast %66 : vector<1x8x128xf32> to vector<8x128xf32>
    %68 = vector.shape_cast %65 : vector<8x128xf32> to vector<1x8x128xf32>
    tpu.vector_store %arg4[%c7_49, %c0_50, %c0_51], %68 {strides = array<i32>} : memref<16x8x128xf32, #tpu.memory_space<vmem>>, vector<1x8x128xf32>,
    %c8 = arith.constant 8 : index
    %c0_52 = arith.constant 0 : index
    %c0_53 = arith.constant 0 : index
    %69 = vector.load %arg1[%c8, %c0_52, %c0_53] : memref<16x8x128xf32, #tpu.memory_space<vmem>>, vector<1x8x128xf32>
    %70 = vector.shape_cast %69 : vector<1x8x128xf32> to vector<8x128xf32>
    %cst_54 = arith.constant dense<0.000000e+00> : vector<8x128xf32>
    %71 = tpu.matmul %65, %3, %cst_54 {dimension_numbers = #tpu.dot_dimension_numbers<[1], [0], [0], [1], [0, 0, 1, 1], [], []>} : vector<8x128xf32>, vector<128x128xf32>, vector<8x128xf32> -> vector<8x128xf32>
    %72 = arith.addf %70, %71 : vector<8x128xf32>
    %73 = math.tanh %72 : vector<8x128xf32>
    %c8_55 = arith.constant 8 : index
    %c0_56 = arith.constant 0 : index
    %c0_57 = arith.constant 0 : index
    %74 = vector.load %arg4[%c8_55, %c0_56, %c0_57] : memref<16x8x128xf32, #tpu.memory_space<vmem>>, vector<1x8x128xf32>
    %75 = vector.shape_cast %74 : vector<1x8x128xf32> to vector<8x128xf32>
    %76 = vector.shape_cast %73 : vector<8x128xf32> to vector<1x8x128xf32>
    tpu.vector_store %arg4[%c8_55, %c0_56, %c0_57], %76 {strides = array<i32>} : memref<16x8x128xf32, #tpu.memory_space<vmem>>, vector<1x8x128xf32>,
    %c9 = arith.constant 9 : index
    %c0_58 = arith.constant 0 : index
    %c0_59 = arith.constant 0 : index
    %77 = vector.load %arg1[%c9, %c0_58, %c0_59] : memref<16x8x128xf32, #tpu.memory_space<vmem>>, vector<1x8x128xf32>
    %78 = vector.shape_cast %77 : vector<1x8x128xf32> to vector<8x128xf32>
    %cst_60 = arith.constant dense<0.000000e+00> : vector<8x128xf32>
    %79 = tpu.matmul %73, %3, %cst_60 {dimension_numbers = #tpu.dot_dimension_numbers<[1], [0], [0], [1], [0, 0, 1, 1], [], []>} : vector<8x128xf32>, vector<128x128xf32>, vector<8x128xf32> -> vector<8x128xf32>
    %80 = arith.addf %78, %79 : vector<8x128xf32>
    %81 = math.tanh %80 : vector<8x128xf32>
    %c9_61 = arith.constant 9 : index
    %c0_62 = arith.constant 0 : index
    %c0_63 = arith.constant 0 : index
    %82 = vector.load %arg4[%c9_61, %c0_62, %c0_63] : memref<16x8x128xf32, #tpu.memory_space<vmem>>, vector<1x8x128xf32>
    %83 = vector.shape_cast %82 : vector<1x8x128xf32> to vector<8x128xf32>
    %84 = vector.shape_cast %81 : vector<8x128xf32> to vector<1x8x128xf32>
    tpu.vector_store %arg4[%c9_61, %c0_62, %c0_63], %84 {strides = array<i32>} : memref<16x8x128xf32, #tpu.memory_space<vmem>>, vector<1x8x128xf32>,
    %c10 = arith.constant 10 : index
    %c0_64 = arith.constant 0 : index
    %c0_65 = arith.constant 0 : index
    %85 = vector.load %arg1[%c10, %c0_64, %c0_65] : memref<16x8x128xf32, #tpu.memory_space<vmem>>, vector<1x8x128xf32>
    %86 = vector.shape_cast %85 : vector<1x8x128xf32> to vector<8x128xf32>
    %cst_66 = arith.constant dense<0.000000e+00> : vector<8x128xf32>
    %87 = tpu.matmul %81, %3, %cst_66 {dimension_numbers = #tpu.dot_dimension_numbers<[1], [0], [0], [1], [0, 0, 1, 1], [], []>} : vector<8x128xf32>, vector<128x128xf32>, vector<8x128xf32> -> vector<8x128xf32>
    %88 = arith.addf %86, %87 : vector<8x128xf32>
    %89 = math.tanh %88 : vector<8x128xf32>
    %c10_67 = arith.constant 10 : index
    %c0_68 = arith.constant 0 : index
    %c0_69 = arith.constant 0 : index
    %90 = vector.load %arg4[%c10_67, %c0_68, %c0_69] : memref<16x8x128xf32, #tpu.memory_space<vmem>>, vector<1x8x128xf32>
    %91 = vector.shape_cast %90 : vector<1x8x128xf32> to vector<8x128xf32>
    %92 = vector.shape_cast %89 : vector<8x128xf32> to vector<1x8x128xf32>
    tpu.vector_store %arg4[%c10_67, %c0_68, %c0_69], %92 {strides = array<i32>} : memref<16x8x128xf32, #tpu.memory_space<vmem>>, vector<1x8x128xf32>,
    %c11 = arith.constant 11 : index
    %c0_70 = arith.constant 0 : index
    %c0_71 = arith.constant 0 : index
    %93 = vector.load %arg1[%c11, %c0_70, %c0_71] : memref<16x8x128xf32, #tpu.memory_space<vmem>>, vector<1x8x128xf32>
    %94 = vector.shape_cast %93 : vector<1x8x128xf32> to vector<8x128xf32>
    %cst_72 = arith.constant dense<0.000000e+00> : vector<8x128xf32>
    %95 = tpu.matmul %89, %3, %cst_72 {dimension_numbers = #tpu.dot_dimension_numbers<[1], [0], [0], [1], [0, 0, 1, 1], [], []>} : vector<8x128xf32>, vector<128x128xf32>, vector<8x128xf32> -> vector<8x128xf32>
    %96 = arith.addf %94, %95 : vector<8x128xf32>
    %97 = math.tanh %96 : vector<8x128xf32>
    %c11_73 = arith.constant 11 : index
    %c0_74 = arith.constant 0 : index
    %c0_75 = arith.constant 0 : index
    %98 = vector.load %arg4[%c11_73, %c0_74, %c0_75] : memref<16x8x128xf32, #tpu.memory_space<vmem>>, vector<1x8x128xf32>
    %99 = vector.shape_cast %98 : vector<1x8x128xf32> to vector<8x128xf32>
    %100 = vector.shape_cast %97 : vector<8x128xf32> to vector<1x8x128xf32>
    tpu.vector_store %arg4[%c11_73, %c0_74, %c0_75], %100 {strides = array<i32>} : memref<16x8x128xf32, #tpu.memory_space<vmem>>, vector<1x8x128xf32>,
    %c12 = arith.constant 12 : index
    %c0_76 = arith.constant 0 : index
    %c0_77 = arith.constant 0 : index
    %101 = vector.load %arg1[%c12, %c0_76, %c0_77] : memref<16x8x128xf32, #tpu.memory_space<vmem>>, vector<1x8x128xf32>
    %102 = vector.shape_cast %101 : vector<1x8x128xf32> to vector<8x128xf32>
    %cst_78 = arith.constant dense<0.000000e+00> : vector<8x128xf32>
    %103 = tpu.matmul %97, %3, %cst_78 {dimension_numbers = #tpu.dot_dimension_numbers<[1], [0], [0], [1], [0, 0, 1, 1], [], []>} : vector<8x128xf32>, vector<128x128xf32>, vector<8x128xf32> -> vector<8x128xf32>
    %104 = arith.addf %102, %103 : vector<8x128xf32>
    %105 = math.tanh %104 : vector<8x128xf32>
    %c12_79 = arith.constant 12 : index
    %c0_80 = arith.constant 0 : index
    %c0_81 = arith.constant 0 : index
    %106 = vector.load %arg4[%c12_79, %c0_80, %c0_81] : memref<16x8x128xf32, #tpu.memory_space<vmem>>, vector<1x8x128xf32>
    %107 = vector.shape_cast %106 : vector<1x8x128xf32> to vector<8x128xf32>
    %108 = vector.shape_cast %105 : vector<8x128xf32> to vector<1x8x128xf32>
    tpu.vector_store %arg4[%c12_79, %c0_80, %c0_81], %108 {strides = array<i32>} : memref<16x8x128xf32, #tpu.memory_space<vmem>>, vector<1x8x128xf32>,
    %c13 = arith.constant 13 : index
    %c0_82 = arith.constant 0 : index
    %c0_83 = arith.constant 0 : index
    %109 = vector.load %arg1[%c13, %c0_82, %c0_83] : memref<16x8x128xf32, #tpu.memory_space<vmem>>, vector<1x8x128xf32>
    %110 = vector.shape_cast %109 : vector<1x8x128xf32> to vector<8x128xf32>
    %cst_84 = arith.constant dense<0.000000e+00> : vector<8x128xf32>
    %111 = tpu.matmul %105, %3, %cst_84 {dimension_numbers = #tpu.dot_dimension_numbers<[1], [0], [0], [1], [0, 0, 1, 1], [], []>} : vector<8x128xf32>, vector<128x128xf32>, vector<8x128xf32> -> vector<8x128xf32>
    %112 = arith.addf %110, %111 : vector<8x128xf32>
    %113 = math.tanh %112 : vector<8x128xf32>
    %c13_85 = arith.constant 13 : index
    %c0_86 = arith.constant 0 : index
    %c0_87 = arith.constant 0 : index
    %114 = vector.load %arg4[%c13_85, %c0_86, %c0_87] : memref<16x8x128xf32, #tpu.memory_space<vmem>>, vector<1x8x128xf32>
    %115 = vector.shape_cast %114 : vector<1x8x128xf32> to vector<8x128xf32>
    %116 = vector.shape_cast %113 : vector<8x128xf32> to vector<1x8x128xf32>
    tpu.vector_store %arg4[%c13_85, %c0_86, %c0_87], %116 {strides = array<i32>} : memref<16x8x128xf32, #tpu.memory_space<vmem>>, vector<1x8x128xf32>,
    %c14 = arith.constant 14 : index
    %c0_88 = arith.constant 0 : index
    %c0_89 = arith.constant 0 : index
    %117 = vector.load %arg1[%c14, %c0_88, %c0_89] : memref<16x8x128xf32, #tpu.memory_space<vmem>>, vector<1x8x128xf32>
    %118 = vector.shape_cast %117 : vector<1x8x128xf32> to vector<8x128xf32>
    %cst_90 = arith.constant dense<0.000000e+00> : vector<8x128xf32>
    %119 = tpu.matmul %113, %3, %cst_90 {dimension_numbers = #tpu.dot_dimension_numbers<[1], [0], [0], [1], [0, 0, 1, 1], [], []>} : vector<8x128xf32>, vector<128x128xf32>, vector<8x128xf32> -> vector<8x128xf32>
    %120 = arith.addf %118, %119 : vector<8x128xf32>
    %121 = math.tanh %120 : vector<8x128xf32>
    %c14_91 = arith.constant 14 : index
    %c0_92 = arith.constant 0 : index
    %c0_93 = arith.constant 0 : index
    %122 = vector.load %arg4[%c14_91, %c0_92, %c0_93] : memref<16x8x128xf32, #tpu.memory_space<vmem>>, vector<1x8x128xf32>
    %123 = vector.shape_cast %122 : vector<1x8x128xf32> to vector<8x128xf32>
    %124 = vector.shape_cast %121 : vector<8x128xf32> to vector<1x8x128xf32>
    tpu.vector_store %arg4[%c14_91, %c0_92, %c0_93], %124 {strides = array<i32>} : memref<16x8x128xf32, #tpu.memory_space<vmem>>, vector<1x8x128xf32>,
    %c15 = arith.constant 15 : index
    %c0_94 = arith.constant 0 : index
    %c0_95 = arith.constant 0 : index
    %125 = vector.load %arg1[%c15, %c0_94, %c0_95] : memref<16x8x128xf32, #tpu.memory_space<vmem>>, vector<1x8x128xf32>
    %126 = vector.shape_cast %125 : vector<1x8x128xf32> to vector<8x128xf32>
    %cst_96 = arith.constant dense<0.000000e+00> : vector<8x128xf32>
    %127 = tpu.matmul %121, %3, %cst_96 {dimension_numbers = #tpu.dot_dimension_numbers<[1], [0], [0], [1], [0, 0, 1, 1], [], []>} : vector<8x128xf32>, vector<128x128xf32>, vector<8x128xf32> -> vector<8x128xf32>
    %128 = arith.addf %126, %127 : vector<8x128xf32>
    %129 = math.tanh %128 : vector<8x128xf32>
    %c15_97 = arith.constant 15 : index
    %c0_98 = arith.constant 0 : index
    %c0_99 = arith.constant 0 : index
    %130 = vector.load %arg4[%c15_97, %c0_98, %c0_99] : memref<16x8x128xf32, #tpu.memory_space<vmem>>, vector<1x8x128xf32>
    %131 = vector.shape_cast %130 : vector<1x8x128xf32> to vector<8x128xf32>
    %132 = vector.shape_cast %129 : vector<8x128xf32> to vector<1x8x128xf32>
    tpu.vector_store %arg4[%c15_97, %c0_98, %c0_99], %132 {strides = array<i32>} : memref<16x8x128xf32, #tpu.memory_space<vmem>>, vector<1x8x128xf32>,
    %c0_100 = arith.constant 0 : index
    %c0_101 = arith.constant 0 : index
    %133 = vector.load %arg5[%c0_100, %c0_101] : memref<8x128xf32, #tpu.memory_space<vmem>>, vector<8x128xf32>
    tpu.vector_store %arg5[%c0_100, %c0_101], %129 {strides = array<i32>} : memref<8x128xf32, #tpu.memory_space<vmem>>, vector<8x128xf32>,
    return
  }
  func.func @transform_0(%arg0: i32) -> (i32, i32, i32) {
    %c0_i32 = arith.constant 0 : i32
    %c0_i32_0 = arith.constant 0 : i32
    %c0_i32_1 = arith.constant 0 : i32
    return %arg0, %c0_i32, %c0_i32_0 : i32, i32, i32
  }
  func.func @transform_1(%arg0: i32) -> (i32, i32) {
    %c0_i32 = arith.constant 0 : i32
    %c0_i32_0 = arith.constant 0 : i32
    %c0_i32_1 = arith.constant 0 : i32
    return %c0_i32, %c0_i32_0 : i32, i32
  }
  func.func @transform_2(%arg0: i32) -> (i32, i32) {
    %c0_i32 = arith.constant 0 : i32
    %c0_i32_0 = arith.constant 0 : i32
    %c0_i32_1 = arith.constant 0 : i32
    return %c0_i32, %c0_i32_0 : i32, i32
  }
  func.func @transform_3(%arg0: i32) -> (i32, i32, i32) {
    %c0_i32 = arith.constant 0 : i32
    %c0_i32_0 = arith.constant 0 : i32
    %c0_i32_1 = arith.constant 0 : i32
    return %arg0, %c0_i32, %c0_i32_0 : i32, i32, i32
  }
}

</mosaic_0001>

<llo_original>
// kernel: tpu_custom_call.1
$region0: #{tpu_custom_call.1}
  #allocation0 [shape = 'u32[]', space=smem, size = 0x4, offset = 0x4, fixed_abs, tag = 'smem constant byte address 0x4 - core index']
  #allocation1 [shape = 'u32[72,128]{1,0:T(1,128)}', space=vmem, size = 0x9000, scoped, tag = 'internal scratch']
  #allocation2 [shape = 'f32[8,128]{1,0:T(8,128)}', space=vmem, size = 0x1000, scoped, tag = 'scratch operand']
  %s0 = inlined_call_operand.hbm [shape: f32[32,8,128], index: 0, kind: input, shape index: {}]
  %s1 = inlined_call_operand.hbm [shape: f32[128,128], index: 1, kind: input, shape index: {}]
  %s2 = inlined_call_operand.hbm [shape: f32[8,128], index: 2, kind: input, shape index: {}]
  %s3 = inlined_call_operand.hbm [shape: f32[32,8,128], index: 3, kind: output, shape index: {}]
  %s4 = sld [smem:[#allocation0]]
  $region61: #{tpu_custom_call.1} parent=0
    _
  %s6 = ssub.s32 1, %s4
  %s7 = scalar_select 0, %s6, %s4
  $region1: #{tpu_custom_call.1} parent=0
    #allocation3 [shape = 'u8[131072]{0}', space=vmem, size = 0x20000, scoped, tag = 'input window, operand 0']
    #allocation4 [shape = 's32[2]{0}', space=sflag, size = 0x8, scoped, tag = 'scoped memory for tpu_custom_call.1']
    #allocation5 [shape = 's32[2]{0}', space=sflag, size = 0x8, scoped, tag = 'scoped memory for tpu_custom_call.1']
    #allocation6 [shape = 'u8[65536]{0}', space=vmem, size = 0x10000, scoped, tag = 'input window, operand 1, single buffered']
    #allocation7 [shape = 's32[1]{0}', space=sflag, size = 0x4, scoped, tag = 'scoped memory for tpu_custom_call.1']
    #allocation8 [shape = 'u8[4096]{0}', space=vmem, size = 0x1000, scoped, tag = 'input window, operand 2, single buffered']
    #allocation9 [shape = 'u8[131072]{0}', space=vmem, size = 0x20000, scoped, tag = 'output window, operand 0']
    %8 = vsyncpa [#allocation4], 0
    %s9 = scalar_lea.sflag [#allocation4], 1
    %10 = vsyncpa %s9, 0
    %11 = vsyncpa [#allocation7], 0
    %12 = vsyncpa [#allocation5], 0
    %s13 = scalar_lea.sflag [#allocation5], 1
    %14 = vsyncpa %s13, 0
    loop: start=0, step=1, limit=4
    $region2: #{tpu_custom_call.1} parent=1 // loop_pre_header
      _
    $region3: #{tpu_custom_call.1} parent=1 // loop_header
      %s16 = sphi 0, %s20
      %p17 = scmp.ge.s32.totalorder %s16, 4
      %s26 = sphi 0, %s28
      %s29 = sphi 0, %s26
      %s30 = sphi 0, %s29
      %s46 = sphi 0, %s30
      %s50 = sphi 0, %s50
      %s52 = sphi 0, %s50
      %s53 = sphi 0, %s52
      %s67 = sphi 0, %s53
      %s71 = sphi 0, %s71
      %s73 = sphi 0, %s71
      %s74 = sphi 0, %s73
      %s88 = sphi 0, %s74
      %s94 = sphi 0, %s96
      %s97 = sphi 0, %s94
      %s98 = sphi 0, %s97
      %s114 = sphi 0, %s98
    $region4: #{tpu_custom_call.1} parent=1 // loop_header_branch
      %19 = sbr.rel (%p17) target = $region8
    $region5: #{tpu_custom_call.1} parent=1 // loop_body
      %s21 = ssub.s32 %s16, 1
      %s22 = ssub.s32 %s16, 2
      %s23 = sadd.s32 %s16, 1
      %s24 = ssub.s32 %s16, %s23
      %p25 = scmp.eq.s32.totalorder %s24, 0
      %s27 = sadd.s32 %s26, 1
      %s28 = scalar_select %p25, %s26, %s27
      %p31 = pneg %p25
      %p32 = scmp.eq.s32.totalorder %s16, 1
      %p33 = por %p31, %p32
      %p34 = scmp.ne.s32.totalorder %s26, %s29
      %p35 = scmp.eq.s32.totalorder %s16, 0
      %p36 = por %p34, %p35
      %p37 = scmp.ne.s32.totalorder %s26, %s29
      %p38 = scmp.eq.s32.totalorder %s21, 1
      %p39 = por %p37, %p38
      %p40 = scmp.ne.s32.totalorder %s29, %s30
      %p41 = scmp.eq.s32.totalorder %s21, 0
      %p42 = por %p40, %p41
      %p43 = scmp.ne.s32.totalorder %s29, %s30
      %p44 = scmp.eq.s32.totalorder %s22, 1
      %p45 = por %p43, %p44
      %p47 = scmp.ne.s32.totalorder %s30, %s46
      %p48 = scmp.eq.s32.totalorder %s22, 0
      %p49 = por %p47, %p48
      %s51 = sadd.s32 %s50, 1
      %p54 = scmp.eq.s32.totalorder %s16, 1
      %p55 = scmp.ne.s32.totalorder %s50, %s52
      %p56 = scmp.eq.s32.totalorder %s16, 0
      %p57 = por %p55, %p56
      %p58 = scmp.ne.s32.totalorder %s50, %s52
      %p59 = scmp.eq.s32.totalorder %s21, 1
      %p60 = por %p58, %p59
      %p61 = scmp.ne.s32.totalorder %s52, %s53
      %p62 = scmp.eq.s32.totalorder %s21, 0
      %p63 = por %p61, %p62
      %p64 = scmp.ne.s32.totalorder %s52, %s53
      %p65 = scmp.eq.s32.totalorder %s22, 1
      %p66 = por %p64, %p65
      %p68 = scmp.ne.s32.totalorder %s53, %s67
      %p69 = scmp.eq.s32.totalorder %s22, 0
      %p70 = por %p68, %p69
      %s72 = sadd.s32 %s71, 1
      %p75 = scmp.eq.s32.totalorder %s16, 1
      %p76 = scmp.ne.s32.totalorder %s71, %s73
      %p77 = scmp.eq.s32.totalorder %s16, 0
      %p78 = por %p76, %p77
      %p79 = scmp.ne.s32.totalorder %s71, %s73
      %p80 = scmp.eq.s32.totalorder %s21, 1
      %p81 = por %p79, %p80
      %p82 = scmp.ne.s32.totalorder %s73, %s74
      %p83 = scmp.eq.s32.totalorder %s21, 0
      %p84 = por %p82, %p83
      %p85 = scmp.ne.s32.totalorder %s73, %s74
      %p86 = scmp.eq.s32.totalorder %s22, 1
      %p87 = por %p85, %p86
      %p89 = scmp.ne.s32.totalorder %s74, %s88
      %p90 = scmp.eq.s32.totalorder %s22, 0
      %p91 = por %p89, %p90
      %s92 = ssub.s32 %s16, %s23
      %p93 = scmp.eq.s32.totalorder %s92, 0
      %s95 = sadd.s32 %s94, 1
      %s96 = scalar_select %p93, %s94, %s95
      %p99 = pneg %p93
      %p100 = scmp.eq.s32.totalorder %s16, 1
      %p101 = por %p99, %p100
      %p102 = scmp.ne.s32.totalorder %s94, %s97
      %p103 = scmp.eq.s32.totalorder %s16, 0
      %p104 = por %p102, %p103
      %p105 = scmp.ne.s32.totalorder %s94, %s97
      %p106 = scmp.eq.s32.totalorder %s21, 1
      %p107 = por %p105, %p106
      %p108 = scmp.ne.s32.totalorder %s97, %s98
      %p109 = scmp.eq.s32.totalorder %s21, 0
      %p110 = por %p108, %p109
      %p111 = scmp.ne.s32.totalorder %s97, %s98
      %p112 = scmp.eq.s32.totalorder %s22, 1
      %p113 = por %p111, %p112
      %p115 = scmp.ne.s32.totalorder %s98, %s114
      %p116 = scmp.eq.s32.totalorder %s22, 0
      %p117 = por %p115, %p116
      %p118 = scmp.le.s32.totalorder 1, %s16
      %p119 = scmp.lt.s32.totalorder %s16, 3
      %p120 = pnand %p118, %p119
      %p121 = pneg %p120
      // Predicated region
      $region9: #{tpu_custom_call.1} parent=5 // pred_check
        _
      $region10: #{tpu_custom_call.1} parent=5 // pred_check_branch
        %123 = sbr.rel (%p120) target = $region12
      $region11: #{tpu_custom_call.1} parent=5 // pred_region
        %s124 = ssub.s32 %s16, 1
        // Predicated region
        $region13: #{tpu_custom_call.1} parent=11 // pred_check
          %p125 = pneg %p63
        $region14: #{tpu_custom_call.1} parent=11 // pred_check_branch
          %127 = sbr.rel (%p125) target = $region16
        $region15: #{tpu_custom_call.1} parent=11 // pred_region
          %129 = vsyncadd [#allocation7], 0
          %s130 = sshll.u32 %s1, 4
          %s131 = int_to_ptr.hbm [resolvable:$true] %s130
          %s132 = sshll.u32 [#allocation6], 4
          %s133 = int_to_ptr.vmem [resolvable:$true] %s132
          %138 = dma.hbm_to_vmem [thread:$0]  %s131, 2048, %s133, [#allocation7], 128, 128, 8
        $region16: #{tpu_custom_call.1} parent=11 // pred_fallthru
          _
        // Predicated region
        $region17: #{tpu_custom_call.1} parent=11 // pred_check
          %p139 = pneg %p84
        $region18: #{tpu_custom_call.1} parent=11 // pred_check_branch
          %141 = sbr.rel (%p139) target = $region20
        $region19: #{tpu_custom_call.1} parent=11 // pred_region
          %143 = vsyncadd [#allocation7], 0
          %s145 = sshll.u32 %s2, 4
          %s146 = int_to_ptr.hbm [resolvable:$true] %s145
          %s147 = sshll.u32 [#allocation8], 4
          %s148 = int_to_ptr.vmem [resolvable:$true] %s147
          %150 = dma.hbm_to_vmem [thread:$0]  %s146, 128, %s148, [#allocation7]
        $region20: #{tpu_custom_call.1} parent=11 // pred_fallthru
          _
      $region12: #{tpu_custom_call.1} parent=5 // pred_fallthru
        _
      %p151 = scmp.lt.s32.totalorder %s16, 2
      // Predicated region
      $region21: #{tpu_custom_call.1} parent=5 // pred_check
        %p152 = pneg %p151
      $region22: #{tpu_custom_call.1} parent=5 // pred_check_branch
        %154 = sbr.rel (%p152) target = $region24
      $region23: #{tpu_custom_call.1} parent=5 // pred_region
        // Predicated region
        $region25: #{tpu_custom_call.1} parent=23 // pred_check
          %p155 = pneg %p36
        $region26: #{tpu_custom_call.1} parent=23 // pred_check_branch
          %157 = sbr.rel (%p155) target = $region28
        $region27: #{tpu_custom_call.1} parent=23 // pred_region
          %s158 = sand.u32 %s26, 1
          %s159 = scalar_lea.sflag [#allocation4], %s158
          %s160 = sand.u32 %s26, 1
          %s161 = smul.addr %s160, 128
          %s162 = scalar_lea.vmem [#allocation3], %s161
          %s163 = smul.u32 16, %s16
          %165 = vsyncadd %s159, 0
          %s166 = smul.addr %s163, 8
          %s167 = scalar_lea.hbm %s0, %s166
          %s168 = sshll.u32 %s167, 4
          %s169 = int_to_ptr.hbm [resolvable:$true] %s168
          %s170 = sshll.u32 %s162, 4
          %s171 = int_to_ptr.vmem [resolvable:$true] %s170
          %176 = dma.hbm_to_vmem [thread:$0]  %s169, 2048, %s171, %s159, 128, 128, 8
        $region28: #{tpu_custom_call.1} parent=23 // pred_fallthru
          _
      $region24: #{tpu_custom_call.1} parent=5 // pred_fallthru
        _
      %p177 = scmp.le.s32.totalorder 1, %s16
      %p178 = scmp.lt.s32.totalorder %s16, 3
      %p179 = pnand %p177, %p178
      %p180 = pneg %p179
      // Predicated region
      $region29: #{tpu_custom_call.1} parent=5 // pred_check
        _
      $region30: #{tpu_custom_call.1} parent=5 // pred_check_branch
        %182 = sbr.rel (%p179) target = $region32
      $region31: #{tpu_custom_call.1} parent=5 // pred_region
        %s183 = ssub.s32 %s16, 1
        %s184 = sand.u32 %s29, 1
        %s185 = scalar_lea.sflag [#allocation4], %s184
        %s186 = sand.u32 %s29, 1
        %s187 = smul.addr %s186, 128
        %s188 = scalar_lea.vmem [#allocation3], %s187
        // Predicated region
        $region33: #{tpu_custom_call.1} parent=31 // pred_check
          %p189 = pneg %p42
        $region34: #{tpu_custom_call.1} parent=31 // pred_check_branch
          %191 = sbr.rel (%p189) target = $region36
        $region35: #{tpu_custom_call.1} parent=31 // pred_region
          %193 = dma.done %s185, 2048
        $region36: #{tpu_custom_call.1} parent=31 // pred_fallthru
          _
        // Predicated region
        $region37: #{tpu_custom_call.1} parent=31 // pred_check
          %p194 = pneg %p63
        $region38: #{tpu_custom_call.1} parent=31 // pred_check_branch
          %196 = sbr.rel (%p194) target = $region40
        $region39: #{tpu_custom_call.1} parent=31 // pred_region
          %198 = dma.done [#allocation7], 2048
        $region40: #{tpu_custom_call.1} parent=31 // pred_fallthru
          _
        // Predicated region
        $region41: #{tpu_custom_call.1} parent=31 // pred_check
          %p199 = pneg %p84
        $region42: #{tpu_custom_call.1} parent=31 // pred_check_branch
          %201 = sbr.rel (%p199) target = $region44
        $region43: #{tpu_custom_call.1} parent=31 // pred_region
          %203 = dma.done [#allocation7], 128
        $region44: #{tpu_custom_call.1} parent=31 // pred_fallthru
          _
        %s204 = sand.u32 %s29, 1
        %s205 = scalar_lea.sflag [#allocation4], %s204
        %s206 = sand.u32 %s29, 1
        %s207 = smul.addr %s206, 128
        %s208 = scalar_lea.vmem [#allocation3], %s207
        %p209 = pneg %p42
        %p210 = pneg %p39
        %p211 = pneg %p63
        %p212 = pneg %p60
        %p213 = pneg %p84
        %p214 = pneg %p81
        %p215 = pneg %p110
        %p216 = pneg %p107
        %s217 = sand.u32 %s97, 1
        %s218 = scalar_lea.sflag [#allocation5], %s217
        %s219 = sand.u32 %s97, 1
        %s220 = smul.addr %s219, 128
        %s221 = scalar_lea.vmem [#allocation9], %s220
        %s222 = smul.u32 16, %s21
        %s223 = smul.u32 16, %s21
        %p224 = scmp.eq.s32.totalorder %s21, 0
        // Predicated region
        $region45: #{tpu_custom_call.1} parent=31 // pred_check
          %p225 = pneg %p224
        $region46: #{tpu_custom_call.1} parent=31 // pred_check_branch
          %227 = sbr.rel (%p225) target = $region48
        $region47: #{tpu_custom_call.1} parent=31 // pred_region
          %v228 = vld [vmem:[#allocation8] sm:$0xff]
          %229 = vst [vmem:[#allocation2] sm:$0xff] %v228
        $region48: #{tpu_custom_call.1} parent=31 // pred_fallthru
          _
        %v230 = vld [vmem:[#allocation6] sm:$0xff]
        %v231 = vld [vmem:[#allocation6 + $0x8] sm:$0xff]
        %v232 = vld [vmem:[#allocation6 + $0x10] sm:$0xff]
        %v233 = vld [vmem:[#allocation6 + $0x18] sm:$0xff]
        %v234 = vld [vmem:[#allocation6 + $0x20] sm:$0xff]
        %v235 = vld [vmem:[#allocation6 + $0x28] sm:$0xff]
        %v236 = vld [vmem:[#allocation6 + $0x30] sm:$0xff]
        %v237 = vld [vmem:[#allocation6 + $0x38] sm:$0xff]
        %v238 = vld [vmem:[#allocation6 + $0x40] sm:$0xff]
        %v239 = vld [vmem:[#allocation6 + $0x48] sm:$0xff]
        %v240 = vld [vmem:[#allocation6 + $0x50] sm:$0xff]
        %v241 = vld [vmem:[#allocation6 + $0x58] sm:$0xff]
        %v242 = vld [vmem:[#allocation6 + $0x60] sm:$0xff]
        %v243 = vld [vmem:[#allocation6 + $0x68] sm:$0xff]
        %v244 = vld [vmem:[#allocation6 + $0x70] sm:$0xff]
        %v245 = vld [vmem:[#allocation6 + $0x78] sm:$0xff]
        %v246 = vld [vmem:[#allocation2] sm:$0xff]
        %v247 = vld [vmem:[%s188] sm:$0xff]
        %248 = vmatpush.msra.mxu0 %v245
        %249 = vmatpush.msra.mxu0 %v244
        %250 = vmatpush.msra.mxu0 %v243
        %251 = vmatpush.msra.mxu0 %v242
        %252 = vmatpush.msra.mxu0 %v241
        %253 = vmatpush.msra.mxu0 %v240
        %254 = vmatpush.msra.mxu0 %v239
        %255 = vmatpush.msra.mxu0 %v238
        %256 = vmatpush.msra.mxu0 %v237
        %257 = vmatpush.msra.mxu0 %v236
        %258 = vmatpush.msra.mxu0 %v235
        %259 = vmatpush.msra.mxu0 %v234
        %260 = vmatpush.msra.mxu0 %v233
        %261 = vmatpush.msra.mxu0 %v232
        %262 = vmatpush.msra.mxu0 %v231
        %263 = vmatpush.msra.mxu0 %v230
        %264 = vmatmul.f32.gmra.mxu0 %v246
        %v265 = vpop.f32.mrf.mxu0
        %v266 = vadd.f32 0.0, %v265
        %267 = vdwg.mxu0
        %v268 = vadd.f32 %v247, %v266
        %v269 = vtanh.pop %v268
        %270 = vst [vmem:[%s221] sm:$0xff] %v269
        %s271 = scalar_lea.vmem %s188, 8 [#allocation3]
        %v272 = vld [vmem:[%s271] sm:$0xff]
        %273 = vmatpush.msra.mxu0 %v245
        %274 = vmatpush.msra.mxu0 %v244
        %275 = vmatpush.msra.mxu0 %v243
        %276 = vmatpush.msra.mxu0 %v242
        %277 = vmatpush.msra.mxu0 %v241
        %278 = vmatpush.msra.mxu0 %v240
        %279 = vmatpush.msra.mxu0 %v239
        %280 = vmatpush.msra.mxu0 %v238
        %281 = vmatpush.msra.mxu0 %v237
        %282 = vmatpush.msra.mxu0 %v236
        %283 = vmatpush.msra.mxu0 %v235
        %284 = vmatpush.msra.mxu0 %v234
        %285 = vmatpush.msra.mxu0 %v233
        %286 = vmatpush.msra.mxu0 %v232
        %287 = vmatpush.msra.mxu0 %v231
        %288 = vmatpush.msra.mxu0 %v230
        %289 = vmatmul.f32.gmra.mxu0 %v269
        %v290 = vpop.f32.mrf.mxu0
        %v291 = vadd.f32 0.0, %v290
        %292 = vdwg.mxu0
        %v293 = vadd.f32 %v272, %v291
        %v294 = vtanh.pop %v293
        %s295 = scalar_lea.vmem %s221, 8 [#allocation9]
        %296 = vst [vmem:[%s295] sm:$0xff] %v294
        %s297 = scalar_lea.vmem %s188, 16 [#allocation3]
        %v298 = vld [vmem:[%s297] sm:$0xff]
        %299 = vmatpush.msra.mxu0 %v245
        %300 = vmatpush.msra.mxu0 %v244
        %301 = vmatpush.msra.mxu0 %v243
        %302 = vmatpush.msra.mxu0 %v242
        %303 = vmatpush.msra.mxu0 %v241
        %304 = vmatpush.msra.mxu0 %v240
        %305 = vmatpush.msra.mxu0 %v239
        %306 = vmatpush.msra.mxu0 %v238
        %307 = vmatpush.msra.mxu0 %v237
        %308 = vmatpush.msra.mxu0 %v236
        %309 = vmatpush.msra.mxu0 %v235
        %310 = vmatpush.msra.mxu0 %v234
        %311 = vmatpush.msra.mxu0 %v233
        %312 = vmatpush.msra.mxu0 %v232
        %313 = vmatpush.msra.mxu0 %v231
        %314 = vmatpush.msra.mxu0 %v230
        %315 = vmatmul.f32.gmra.mxu0 %v294
        %v316 = vpop.f32.mrf.mxu0
        %v317 = vadd.f32 0.0, %v316
        %318 = vdwg.mxu0
        %v319 = vadd.f32 %v298, %v317
        %v320 = vtanh.pop %v319
        %s321 = scalar_lea.vmem %s221, 16 [#allocation9]
        %322 = vst [vmem:[%s321] sm:$0xff] %v320
        %s323 = scalar_lea.vmem %s188, 24 [#allocation3]
        %v324 = vld [vmem:[%s323] sm:$0xff]
        %325 = vmatpush.msra.mxu0 %v245
        %326 = vmatpush.msra.mxu0 %v244
        %327 = vmatpush.msra.mxu0 %v243
        %328 = vmatpush.msra.mxu0 %v242
        %329 = vmatpush.msra.mxu0 %v241
        %330 = vmatpush.msra.mxu0 %v240
        %331 = vmatpush.msra.mxu0 %v239
        %332 = vmatpush.msra.mxu0 %v238
        %333 = vmatpush.msra.mxu0 %v237
        %334 = vmatpush.msra.mxu0 %v236
        %335 = vmatpush.msra.mxu0 %v235
        %336 = vmatpush.msra.mxu0 %v234
        %337 = vmatpush.msra.mxu0 %v233
        %338 = vmatpush.msra.mxu0 %v232
        %339 = vmatpush.msra.mxu0 %v231
        %340 = vmatpush.msra.mxu0 %v230
        %341 = vmatmul.f32.gmra.mxu0 %v320
        %v342 = vpop.f32.mrf.mxu0
        %v343 = vadd.f32 0.0, %v342
        %344 = vdwg.mxu0
        %v345 = vadd.f32 %v324, %v343
        %v346 = vtanh.pop %v345
        %s347 = scalar_lea.vmem %s221, 24 [#allocation9]
        %348 = vst [vmem:[%s347] sm:$0xff] %v346
        %s349 = scalar_lea.vmem %s188, 32 [#allocation3]
        %v350 = vld [vmem:[%s349] sm:$0xff]
        %351 = vmatpush.msra.mxu0 %v245
        %352 = vmatpush.msra.mxu0 %v244
        %353 = vmatpush.msra.mxu0 %v243
        %354 = vmatpush.msra.mxu0 %v242
        %355 = vmatpush.msra.mxu0 %v241
        %356 = vmatpush.msra.mxu0 %v240
        %357 = vmatpush.msra.mxu0 %v239
        %358 = vmatpush.msra.mxu0 %v238
        %359 = vmatpush.msra.mxu0 %v237
        %360 = vmatpush.msra.mxu0 %v236
        %361 = vmatpush.msra.mxu0 %v235
        %362 = vmatpush.msra.mxu0 %v234
        %363 = vmatpush.msra.mxu0 %v233
        %364 = vmatpush.msra.mxu0 %v232
        %365 = vmatpush.msra.mxu0 %v231
        %366 = vmatpush.msra.mxu0 %v230
        %367 = vmatmul.f32.gmra.mxu0 %v346
        %v368 = vpop.f32.mrf.mxu0
        %v369 = vadd.f32 0.0, %v368
        %370 = vdwg.mxu0
        %v371 = vadd.f32 %v350, %v369
        %v372 = vtanh.pop %v371
        %s373 = scalar_lea.vmem %s221, 32 [#allocation9]
        %374 = vst [vmem:[%s373] sm:$0xff] %v372
        %s375 = scalar_lea.vmem %s188, 40 [#allocation3]
        %v376 = vld [vmem:[%s375] sm:$0xff]
        %377 = vmatpush.msra.mxu0 %v245
        %378 = vmatpush.msra.mxu0 %v244
        %379 = vmatpush.msra.mxu0 %v243
        %380 = vmatpush.msra.mxu0 %v242
        %381 = vmatpush.msra.mxu0 %v241
        %382 = vmatpush.msra.mxu0 %v240
        %383 = vmatpush.msra.mxu0 %v239
        %384 = vmatpush.msra.mxu0 %v238
        %385 = vmatpush.msra.mxu0 %v237
        %386 = vmatpush.msra.mxu0 %v236
        %387 = vmatpush.msra.mxu0 %v235
        %388 = vmatpush.msra.mxu0 %v234
        %389 = vmatpush.msra.mxu0 %v233
        %390 = vmatpush.msra.mxu0 %v232
        %391 = vmatpush.msra.mxu0 %v231
        %392 = vmatpush.msra.mxu0 %v230
        %393 = vmatmul.f32.gmra.mxu0 %v372
        %v394 = vpop.f32.mrf.mxu0
        %v395 = vadd.f32 0.0, %v394
        %396 = vdwg.mxu0
        %v397 = vadd.f32 %v376, %v395
        %v398 = vtanh.pop %v397
        %s399 = scalar_lea.vmem %s221, 40 [#allocation9]
        %400 = vst [vmem:[%s399] sm:$0xff] %v398
        %s401 = scalar_lea.vmem %s188, 48 [#allocation3]
        %v402 = vld [vmem:[%s401] sm:$0xff]
        %403 = vmatpush.msra.mxu0 %v245
        %404 = vmatpush.msra.mxu0 %v244
        %405 = vmatpush.msra.mxu0 %v243
        %406 = vmatpush.msra.mxu0 %v242
        %407 = vmatpush.msra.mxu0 %v241
        %408 = vmatpush.msra.mxu0 %v240
        %409 = vmatpush.msra.mxu0 %v239
        %410 = vmatpush.msra.mxu0 %v238
        %411 = vmatpush.msra.mxu0 %v237
        %412 = vmatpush.msra.mxu0 %v236
        %413 = vmatpush.msra.mxu0 %v235
        %414 = vmatpush.msra.mxu0 %v234
        %415 = vmatpush.msra.mxu0 %v233
        %416 = vmatpush.msra.mxu0 %v232
        %417 = vmatpush.msra.mxu0 %v231
        %418 = vmatpush.msra.mxu0 %v230
        %419 = vmatmul.f32.gmra.mxu0 %v398
        %v420 = vpop.f32.mrf.mxu0
        %v421 = vadd.f32 0.0, %v420
        %422 = vdwg.mxu0
        %v423 = vadd.f32 %v402, %v421
        %v424 = vtanh.pop %v423
        %s425 = scalar_lea.vmem %s221, 48 [#allocation9]
        %426 = vst [vmem:[%s425] sm:$0xff] %v424
        %s427 = scalar_lea.vmem %s188, 56 [#allocation3]
        %v428 = vld [vmem:[%s427] sm:$0xff]
        %429 = vmatpush.msra.mxu0 %v245
        %430 = vmatpush.msra.mxu0 %v244
        %431 = vmatpush.msra.mxu0 %v243
        %432 = vmatpush.msra.mxu0 %v242
        %433 = vmatpush.msra.mxu0 %v241
        %434 = vmatpush.msra.mxu0 %v240
        %435 = vmatpush.msra.mxu0 %v239
        %436 = vmatpush.msra.mxu0 %v238
        %437 = vmatpush.msra.mxu0 %v237
        %438 = vmatpush.msra.mxu0 %v236
        %439 = vmatpush.msra.mxu0 %v235
        %440 = vmatpush.msra.mxu0 %v234
        %441 = vmatpush.msra.mxu0 %v233
        %442 = vmatpush.msra.mxu0 %v232
        %443 = vmatpush.msra.mxu0 %v231
        %444 = vmatpush.msra.mxu0 %v230
        %445 = vmatmul.f32.gmra.mxu0 %v424
        %v446 = vpop.f32.mrf.mxu0
        %v447 = vadd.f32 0.0, %v446
        %448 = vdwg.mxu0
        %v449 = vadd.f32 %v428, %v447
        %v450 = vtanh.pop %v449
        %s451 = scalar_lea.vmem %s221, 56 [#allocation9]
        %452 = vst [vmem:[%s451] sm:$0xff] %v450
        %s453 = scalar_lea.vmem %s188, 64 [#allocation3]
        %v454 = vld [vmem:[%s453] sm:$0xff]
        %455 = vmatpush.msra.mxu0 %v245
        %456 = vmatpush.msra.mxu0 %v244
        %457 = vmatpush.msra.mxu0 %v243
        %458 = vmatpush.msra.mxu0 %v242
        %459 = vmatpush.msra.mxu0 %v241
        %460 = vmatpush.msra.mxu0 %v240
        %461 = vmatpush.msra.mxu0 %v239
        %462 = vmatpush.msra.mxu0 %v238
        %463 = vmatpush.msra.mxu0 %v237
        %464 = vmatpush.msra.mxu0 %v236
        %465 = vmatpush.msra.mxu0 %v235
        %466 = vmatpush.msra.mxu0 %v234
        %467 = vmatpush.msra.mxu0 %v233
        %468 = vmatpush.msra.mxu0 %v232
        %469 = vmatpush.msra.mxu0 %v231
        %470 = vmatpush.msra.mxu0 %v230
        %471 = vmatmul.f32.gmra.mxu0 %v450
        %v472 = vpop.f32.mrf.mxu0
        %v473 = vadd.f32 0.0, %v472
        %474 = vdwg.mxu0
        %v475 = vadd.f32 %v454, %v473
        %v476 = vtanh.pop %v475
        %s477 = scalar_lea.vmem %s221, 64 [#allocation9]
        %478 = vst [vmem:[%s477] sm:$0xff] %v476
        %s479 = scalar_lea.vmem %s188, 72 [#allocation3]
        %v480 = vld [vmem:[%s479] sm:$0xff]
        %481 = vmatpush.msra.mxu0 %v245
        %482 = vmatpush.msra.mxu0 %v244
        %483 = vmatpush.msra.mxu0 %v243
        %484 = vmatpush.msra.mxu0 %v242
        %485 = vmatpush.msra.mxu0 %v241
        %486 = vmatpush.msra.mxu0 %v240
        %487 = vmatpush.msra.mxu0 %v239
        %488 = vmatpush.msra.mxu0 %v238
        %489 = vmatpush.msra.mxu0 %v237
        %490 = vmatpush.msra.mxu0 %v236
        %491 = vmatpush.msra.mxu0 %v235
        %492 = vmatpush.msra.mxu0 %v234
        %493 = vmatpush.msra.mxu0 %v233
        %494 = vmatpush.msra.mxu0 %v232
        %495 = vmatpush.msra.mxu0 %v231
        %496 = vmatpush.msra.mxu0 %v230
        %497 = vmatmul.f32.gmra.mxu0 %v476
        %v498 = vpop.f32.mrf.mxu0
        %v499 = vadd.f32 0.0, %v498
        %500 = vdwg.mxu0
        %v501 = vadd.f32 %v480, %v499
        %v502 = vtanh.pop %v501
        %s503 = scalar_lea.vmem %s221, 72 [#allocation9]
        %504 = vst [vmem:[%s503] sm:$0xff] %v502
        %s505 = scalar_lea.vmem %s188, 80 [#allocation3]
        %v506 = vld [vmem:[%s505] sm:$0xff]
        %507 = vmatpush.msra.mxu0 %v245
        %508 = vmatpush.msra.mxu0 %v244
        %509 = vmatpush.msra.mxu0 %v243
        %510 = vmatpush.msra.mxu0 %v242
        %511 = vmatpush.msra.mxu0 %v241
        %512 = vmatpush.msra.mxu0 %v240
        %513 = vmatpush.msra.mxu0 %v239
        %514 = vmatpush.msra.mxu0 %v238
        %515 = vmatpush.msra.mxu0 %v237
        %516 = vmatpush.msra.mxu0 %v236
        %517 = vmatpush.msra.mxu0 %v235
        %518 = vmatpush.msra.mxu0 %v234
        %519 = vmatpush.msra.mxu0 %v233
        %520 = vmatpush.msra.mxu0 %v232
        %521 = vmatpush.msra.mxu0 %v231
        %522 = vmatpush.msra.mxu0 %v230
        %523 = vmatmul.f32.gmra.mxu0 %v502
        %v524 = vpop.f32.mrf.mxu0
        %v525 = vadd.f32 0.0, %v524
        %526 = vdwg.mxu0
        %v527 = vadd.f32 %v506, %v525
        %v528 = vtanh.pop %v527
        %s529 = scalar_lea.vmem %s221, 80 [#allocation9]
        %530 = vst [vmem:[%s529] sm:$0xff] %v528
        %s531 = scalar_lea.vmem %s188, 88 [#allocation3]
        %v532 = vld [vmem:[%s531] sm:$0xff]
        %533 = vmatpush.msra.mxu0 %v245
        %534 = vmatpush.msra.mxu0 %v244
        %535 = vmatpush.msra.mxu0 %v243
        %536 = vmatpush.msra.mxu0 %v242
        %537 = vmatpush.msra.mxu0 %v241
        %538 = vmatpush.msra.mxu0 %v240
        %539 = vmatpush.msra.mxu0 %v239
        %540 = vmatpush.msra.mxu0 %v238
        %541 = vmatpush.msra.mxu0 %v237
        %542 = vmatpush.msra.mxu0 %v236
        %543 = vmatpush.msra.mxu0 %v235
        %544 = vmatpush.msra.mxu0 %v234
        %545 = vmatpush.msra.mxu0 %v233
        %546 = vmatpush.msra.mxu0 %v232
        %547 = vmatpush.msra.mxu0 %v231
        %548 = vmatpush.msra.mxu0 %v230
        %549 = vmatmul.f32.gmra.mxu0 %v528
        %v550 = vpop.f32.mrf.mxu0
        %v551 = vadd.f32 0.0, %v550
        %552 = vdwg.mxu0
        %v553 = vadd.f32 %v532, %v551
        %v554 = vtanh.pop %v553
        %s555 = scalar_lea.vmem %s221, 88 [#allocation9]
        %556 = vst [vmem:[%s555] sm:$0xff] %v554
        %s557 = scalar_lea.vmem %s188, 96 [#allocation3]
        %v558 = vld [vmem:[%s557] sm:$0xff]
        %559 = vmatpush.msra.mxu0 %v245
        %560 = vmatpush.msra.mxu0 %v244
        %561 = vmatpush.msra.mxu0 %v243
        %562 = vmatpush.msra.mxu0 %v242
        %563 = vmatpush.msra.mxu0 %v241
        %564 = vmatpush.msra.mxu0 %v240
        %565 = vmatpush.msra.mxu0 %v239
        %566 = vmatpush.msra.mxu0 %v238
        %567 = vmatpush.msra.mxu0 %v237
        %568 = vmatpush.msra.mxu0 %v236
        %569 = vmatpush.msra.mxu0 %v235
        %570 = vmatpush.msra.mxu0 %v234
        %571 = vmatpush.msra.mxu0 %v233
        %572 = vmatpush.msra.mxu0 %v232
        %573 = vmatpush.msra.mxu0 %v231
        %574 = vmatpush.msra.mxu0 %v230
        %575 = vmatmul.f32.gmra.mxu0 %v554
        %v576 = vpop.f32.mrf.mxu0
        %v577 = vadd.f32 0.0, %v576
        %578 = vdwg.mxu0
        %v579 = vadd.f32 %v558, %v577
        %v580 = vtanh.pop %v579
        %s581 = scalar_lea.vmem %s221, 96 [#allocation9]
        %582 = vst [vmem:[%s581] sm:$0xff] %v580
        %s583 = scalar_lea.vmem %s188, 104 [#allocation3]
        %v584 = vld [vmem:[%s583] sm:$0xff]
        %585 = vmatpush.msra.mxu0 %v245
        %586 = vmatpush.msra.mxu0 %v244
        %587 = vmatpush.msra.mxu0 %v243
        %588 = vmatpush.msra.mxu0 %v242
        %589 = vmatpush.msra.mxu0 %v241
        %590 = vmatpush.msra.mxu0 %v240
        %591 = vmatpush.msra.mxu0 %v239
        %592 = vmatpush.msra.mxu0 %v238
        %593 = vmatpush.msra.mxu0 %v237
        %594 = vmatpush.msra.mxu0 %v236
        %595 = vmatpush.msra.mxu0 %v235
        %596 = vmatpush.msra.mxu0 %v234
        %597 = vmatpush.msra.mxu0 %v233
        %598 = vmatpush.msra.mxu0 %v232
        %599 = vmatpush.msra.mxu0 %v231
        %600 = vmatpush.msra.mxu0 %v230
        %601 = vmatmul.f32.gmra.mxu0 %v580
        %v602 = vpop.f32.mrf.mxu0
        %v603 = vadd.f32 0.0, %v602
        %604 = vdwg.mxu0
        %v605 = vadd.f32 %v584, %v603
        %v606 = vtanh.pop %v605
        %s607 = scalar_lea.vmem %s221, 104 [#allocation9]
        %608 = vst [vmem:[%s607] sm:$0xff] %v606
        %s609 = scalar_lea.vmem %s188, 112 [#allocation3]
        %v610 = vld [vmem:[%s609] sm:$0xff]
        %611 = vmatpush.msra.mxu0 %v245
        %612 = vmatpush.msra.mxu0 %v244
        %613 = vmatpush.msra.mxu0 %v243
        %614 = vmatpush.msra.mxu0 %v242
        %615 = vmatpush.msra.mxu0 %v241
        %616 = vmatpush.msra.mxu0 %v240
        %617 = vmatpush.msra.mxu0 %v239
        %618 = vmatpush.msra.mxu0 %v238
        %619 = vmatpush.msra.mxu0 %v237
        %620 = vmatpush.msra.mxu0 %v236
        %621 = vmatpush.msra.mxu0 %v235
        %622 = vmatpush.msra.mxu0 %v234
        %623 = vmatpush.msra.mxu0 %v233
        %624 = vmatpush.msra.mxu0 %v232
        %625 = vmatpush.msra.mxu0 %v231
        %626 = vmatpush.msra.mxu0 %v230
        %627 = vmatmul.f32.gmra.mxu0 %v606
        %v628 = vpop.f32.mrf.mxu0
        %v629 = vadd.f32 0.0, %v628
        %630 = vdwg.mxu0
        %v631 = vadd.f32 %v610, %v629
        %v632 = vtanh.pop %v631
        %s633 = scalar_lea.vmem %s221, 112 [#allocation9]
        %634 = vst [vmem:[%s633] sm:$0xff] %v632
        %s635 = scalar_lea.vmem %s188, 120 [#allocation3]
        %v636 = vld [vmem:[%s635] sm:$0xff]
        %637 = vmatpush.msra.mxu0 %v245
        %638 = vmatpush.msra.mxu0 %v244
        %639 = vmatpush.msra.mxu0 %v243
        %640 = vmatpush.msra.mxu0 %v242
        %641 = vmatpush.msra.mxu0 %v241
        %642 = vmatpush.msra.mxu0 %v240
        %643 = vmatpush.msra.mxu0 %v239
        %644 = vmatpush.msra.mxu0 %v238
        %645 = vmatpush.msra.mxu0 %v237
        %646 = vmatpush.msra.mxu0 %v236
        %647 = vmatpush.msra.mxu0 %v235
        %648 = vmatpush.msra.mxu0 %v234
        %649 = vmatpush.msra.mxu0 %v233
        %650 = vmatpush.msra.mxu0 %v232
        %651 = vmatpush.msra.mxu0 %v231
        %652 = vmatpush.msra.mxu0 %v230
        %653 = vmatmul.f32.gmra.mxu0 %v632
        %v654 = vpop.f32.mrf.mxu0
        %v655 = vadd.f32 0.0, %v654
        %656 = vdwg.mxu0
        %v657 = vadd.f32 %v636, %v655
        %v658 = vtanh.pop %v657
        %s659 = scalar_lea.vmem %s221, 120 [#allocation9]
        %660 = vst [vmem:[%s659] sm:$0xff] %v658
        %661 = vst [vmem:[#allocation2] sm:$0xff] %v658
        %s662 = sand.u32 %s97, 1
        %s663 = scalar_lea.sflag [#allocation5], %s662
        %s664 = sand.u32 %s97, 1
        %s665 = smul.addr %s664, 128
        %s666 = scalar_lea.vmem [#allocation9], %s665
        // Predicated region
        $region49: #{tpu_custom_call.1} parent=31 // pred_check
          %p667 = pneg %p107
        $region50: #{tpu_custom_call.1} parent=31 // pred_check_branch
          %669 = sbr.rel (%p667) target = $region52
        $region51: #{tpu_custom_call.1} parent=31 // pred_region
          %s670 = smul.u32 16, %s21
          %672 = vsyncadd %s663, 0
          %s673 = smul.addr %s670, 8
          %s674 = scalar_lea.hbm %s3, %s673
          %s675 = sshll.u32 %s666, 4
          %s676 = int_to_ptr.vmem [resolvable:$true] %s675
          %s677 = sshll.u32 %s674, 4
          %s678 = int_to_ptr.hbm [resolvable:$true] %s677
          %683 = dma.vmem_to_hbm [thread:$0]  %s676, 2048, %s678, %s663, 128, 128, 8
        $region52: #{tpu_custom_call.1} parent=31 // pred_fallthru
          _
      $region32: #{tpu_custom_call.1} parent=5 // pred_fallthru
        _
      %p684 = scmp.le.s32.totalorder 2, %s16
      // Predicated region
      $region53: #{tpu_custom_call.1} parent=5 // pred_check
        %p685 = pneg %p684
      $region54: #{tpu_custom_call.1} parent=5 // pred_check_branch
        %687 = sbr.rel (%p685) target = $region56
      $region55: #{tpu_custom_call.1} parent=5 // pred_region
        %s688 = ssub.s32 %s16, 2
        // Predicated region
        $region57: #{tpu_custom_call.1} parent=55 // pred_check
          %p689 = pneg %p113
        $region58: #{tpu_custom_call.1} parent=55 // pred_check_branch
          %691 = sbr.rel (%p689) target = $region60
        $region59: #{tpu_custom_call.1} parent=55 // pred_region
          %s692 = sand.u32 %s98, 1
          %s693 = scalar_lea.sflag [#allocation5], %s692
          %s694 = sand.u32 %s98, 1
          %s695 = smul.addr %s694, 128
          %s696 = scalar_lea.vmem [#allocation9], %s695
          %698 = dma.done %s693, 2048
        $region60: #{tpu_custom_call.1} parent=55 // pred_fallthru
          _
      $region56: #{tpu_custom_call.1} parent=5 // pred_fallthru
        _
    $region6: #{tpu_custom_call.1} parent=1 // loop_footer
      %s20 = sadd.s32 1, %s16
    $region7: #{tpu_custom_call.1} parent=1 // loop_footer_branch
      %15 = sbr.rel target = $region3
    $region8: #{tpu_custom_call.1} parent=1 // loop_exit
      _
    %699 = vsyncpa [#allocation4], 1
    %s700 = scalar_lea.sflag [#allocation4], 1
    %701 = vsyncpa %s700, 1
    %702 = vsyncpa [#allocation7], 1
    %703 = vsyncpa [#allocation5], 1
    %s704 = scalar_lea.sflag [#allocation5], 1
    %705 = vsyncpa %s704, 1

</llo_original>
